<compile_context>
chip_gen: v7x
topology: tpu7x:2x2x1
jax: 0.10.0
libtpu: 0.0.40
codegen_flags: <defaults>
</compile_context>

<pallas_src>
import functools

import jax
import jax.numpy as jnp
from jax.experimental import pallas as pl
from jax.experimental.pallas import tpu as pltpu


def _linear_kernel(x_ref, w_ref, b_ref, o_ref, *, n_valid_rows, group, feat):
    """One batch tile of y = x @ w^T + b (VPU multiply + lane reduce).

    x_ref: (TB, group*feat) VMEM, input dtype (f32 or bf16)
    w_ref: (1,  group*feat) VMEM f32 (grid-invariant -> stays resident)
    b_ref: (1, 1)           SMEM f32 scalar
    o_ref: (TB, group)      VMEM, output dtype
    """
    tb = x_ref.shape[0]
    xf = x_ref[...].astype(jnp.float32)            # bf16 in -> f32 accumulate
    w = w_ref[...]                                 # (1, group*feat) f32
    prod = xf * w                                  # (TB, group*feat) on the VPU

    # Segmented cross-lane reduce: one output column per packed row-group.
    cols = [
        jnp.sum(prod[:, q * feat:(q + 1) * feat], axis=-1, keepdims=True)
        for q in range(group)
    ]
    y = (cols[0] if group == 1 else jnp.concatenate(cols, axis=-1))
    y = y + b_ref[0, 0]                            # (TB, group) f32

    # Defensive tail mask: rows of the (partial) last tile past the real batch
    # are garbage reads; zero them.  (They are also dropped by the partial
    # output-block writeback, so this is belt-and-braces.)
    row = (jax.lax.broadcasted_iota(jnp.int32, (tb, 1), 0)
           + pl.program_id(0) * tb)
    y = jnp.where(row < n_valid_rows, y, 0.0)

    o_ref[...] = y.astype(o_ref.dtype)


def linear_net_forward(x, weight, bias, *, target_step_bytes=8 << 20):
    """LinearNet forward.

    x:      (B, F) float32 or bfloat16 (fed to the kernel as-is)
    weight: (1, F) float   (PyTorch nn.Linear weight layout)
    bias:   (1,)   float
    returns (B, 1) in x's dtype.
    """
    B, F = x.shape
    out_dtype = x.dtype
    w = weight.astype(jnp.float32).reshape(1, F)
    b = bias.astype(jnp.float32).reshape(1, 1)

    # --- Skinny-feature packing: g rows per 128-wide lane row (free reshape).
    if F < 128 and 128 % F == 0 and B % (128 // F) == 0:
        g = 128 // F
    else:
        g = 1
    Bp, Fp = B // g, g * F
    xp = x.reshape(Bp, Fp) if g > 1 else x          # row-major bitcast, no copy
    wp = jnp.tile(w, (1, g)) if g > 1 else w

    # --- Batch tile: ~target_step_bytes of x per grid step, multiple of 8 rows.
    itemsize = x.dtype.itemsize
    row_bytes = Fp * itemsize
    tb = (target_step_bytes // row_bytes) // 8 * 8
    tb = max(8, min(tb, ((Bp + 7) // 8) * 8))
    num_tiles = pl.cdiv(Bp, tb)

    # --- Explicit VMEM budget: double-buffered x tile + resident weight +
    # output tile, capped below v7x's 64 MiB per-TC VMEM.
    need = (2 * tb * Fp * itemsize          # x (double-buffered)
            + 2 * Fp * 4                    # weight
            + 2 * tb * g * jnp.dtype(out_dtype).itemsize)  # output
    vmem_limit = int(min(max(need + (4 << 20), 32 << 20), 60 << 20))

    kernel = functools.partial(_linear_kernel,
                               n_valid_rows=Bp, group=g, feat=F)

    out = pl.pallas_call(
        kernel,
        out_shape=jax.ShapeDtypeStruct((Bp, g), out_dtype),
        grid=(num_tiles,),
        in_specs=[
            # x: one batch tile per grid step (pipelined / double-buffered).
            pl.BlockSpec((tb, Fp), lambda i: (i, 0)),
            # weight: constant block index -> stays resident in VMEM.
            # (Optionally pipeline_mode=pl.Buffered(1) to single-buffer it.)
            pl.BlockSpec((1, Fp), lambda i: (0, 0)),
            # bias: tiny scalar, keep it in SMEM.
            pl.BlockSpec(memory_space=pltpu.MemorySpace.SMEM),
        ],
        # Per-step output tile is (tb, g): F x less traffic than x, so store
        # width is immaterial; wrapper reshape below is a free bitcast.
        out_specs=pl.BlockSpec((tb, g), lambda i: (i, 0)),
        compiler_params=pltpu.CompilerParams(
            dimension_semantics=("parallel",),
            vmem_limit_bytes=vmem_limit,
        ),
    )(xp, wp, b)

    # Back to the PyTorch nn.Linear output layout (B, 1).
    return out.reshape(B, 1)


if __name__ == "__main__":
    n_feature = 32
    batch = 8

    key = jax.random.PRNGKey(0)
    kx, kw, kb = jax.random.split(key, 3)

    # Deterministic synthetic parameters (shapes match nn.Linear(n_feature, 1)).
    x = jax.random.normal(kx, (batch, n_feature), dtype=jnp.float32)
    bound = 1.0 / jnp.sqrt(n_feature)
    weight = jax.random.uniform(kw, (1, n_feature), minval=-bound, maxval=bound,
                                dtype=jnp.float32)
    bias = jax.random.uniform(kb, (1,), minval=-bound, maxval=bound,
                              dtype=jnp.float32)

    # Packed path (F=32 -> 4 rows per lane row).
    y = linear_net_forward(x, weight, bias)
    y = jax.block_until_ready(y)
    y_ref = x @ weight.T + bias
    assert y.shape == (batch, 1)
    assert jnp.allclose(y, y_ref, atol=1e-5, rtol=1e-5)

    # Ragged-batch path (B % 8 != 0, no padding pass): exercises the partial
    # last tile + in-kernel row mask.
    x2 = jax.random.normal(kx, (batch + 2, n_feature), dtype=jnp.float32)
    y2 = jax.block_until_ready(linear_net_forward(x2, weight, bias))
    y2_ref = x2 @ weight.T + bias
    assert y2.shape == (batch + 2, 1)
    assert jnp.allclose(y2, y2_ref, atol=1e-5, rtol=1e-5)

    print("KERNEL_OK")
</pallas_src>

<mosaic_0001>
module attributes {stable_mosaic.version = 11 : i64} {
  func.func @_linear_kernel(%arg0: i32, %arg1: memref<8x128xf32, #tpu.memory_space<vmem>>, %arg2: memref<1x128xf32, #tpu.memory_space<vmem>>, %arg3: memref<1x1xf32, #tpu.memory_space<smem>>, %arg4: memref<8x4xf32, #tpu.memory_space<vmem>>) attributes {dimension_semantics = [#tpu.dimension_semantics<parallel>], iteration_bounds = array<i64: 1>, scalar_prefetch = 0 : i64, scratch_operands = 0 : i64, tpu.core_type = #tpu.core_type<tc>, window_params = [{transform_indices = @transform_0, window_bounds = array<i64: 8, 128>}, {pipeline_mode = #tpu.pipeline_mode<synchronous>, transform_indices = @transform_1, window_bounds = array<i64: 1, 128>}, {transform_indices = @transform_2, window_bounds = array<i64: 1, 1>}, {transform_indices = @transform_3, window_bounds = array<i64: 8, 4>}]} {
    %c0 = arith.constant 0 : index
    %c0_0 = arith.constant 0 : index
    %0 = vector.load %arg1[%c0, %c0_0] : memref<8x128xf32, #tpu.memory_space<vmem>>, vector<8x128xf32>
    %c0_1 = arith.constant 0 : index
    %c0_2 = arith.constant 0 : index
    %1 = vector.load %arg2[%c0_1, %c0_2] : memref<1x128xf32, #tpu.memory_space<vmem>>, vector<1x128xf32>
    %2 = vector.broadcast %1 : vector<1x128xf32> to vector<8x128xf32>
    %3 = arith.mulf %0, %2 : vector<8x128xf32>
    %4 = vector.extract_strided_slice %3 {offsets = [0, 0], sizes = [8, 32], strides = [1, 1]} : vector<8x128xf32> to vector<8x32xf32>
    %cst = arith.constant dense<0.000000e+00> : vector<8xf32>
    %5 = vector.multi_reduction <add>, %4, %cst [1] : vector<8x32xf32> to vector<8xf32>
    %6 = vector.shape_cast %5 : vector<8xf32> to vector<8x1xf32>
    %7 = vector.extract_strided_slice %3 {offsets = [0, 32], sizes = [8, 32], strides = [1, 1]} : vector<8x128xf32> to vector<8x32xf32>
    %cst_3 = arith.constant dense<0.000000e+00> : vector<8xf32>
    %8 = vector.multi_reduction <add>, %7, %cst_3 [1] : vector<8x32xf32> to vector<8xf32>
    %9 = vector.shape_cast %8 : vector<8xf32> to vector<8x1xf32>
    %10 = vector.extract_strided_slice %3 {offsets = [0, 64], sizes = [8, 32], strides = [1, 1]} : vector<8x128xf32> to vector<8x32xf32>
    %cst_4 = arith.constant dense<0.000000e+00> : vector<8xf32>
    %11 = vector.multi_reduction <add>, %10, %cst_4 [1] : vector<8x32xf32> to vector<8xf32>
    %12 = vector.shape_cast %11 : vector<8xf32> to vector<8x1xf32>
    %13 = vector.extract_strided_slice %3 {offsets = [0, 96], sizes = [8, 32], strides = [1, 1]} : vector<8x128xf32> to vector<8x32xf32>
    %cst_5 = arith.constant dense<0.000000e+00> : vector<8xf32>
    %14 = vector.multi_reduction <add>, %13, %cst_5 [1] : vector<8x32xf32> to vector<8xf32>
    %15 = vector.shape_cast %14 : vector<8xf32> to vector<8x1xf32>
    %16 = tpu.concatenate %6, %9, %12, %15 in 1 : vector<8x1xf32>, vector<8x1xf32>, vector<8x1xf32>, vector<8x1xf32> -> vector<8x4xf32>
    %c0_6 = arith.constant 0 : index
    %c0_7 = arith.constant 0 : index
    %17 = memref.load %arg3[%c0_6, %c0_7] : memref<1x1xf32, #tpu.memory_space<smem>>
    %18 = vector.broadcast %17 : f32 to vector<8x4xf32>
    %19 = arith.addf %16, %18 : vector<8x4xf32>
    %20 = tpu.iota {dimensions = array<i32: 0>} : vector<8x1xi32>
    %c8_i32 = arith.constant 8 : i32
    %21 = arith.muli %arg0, %c8_i32 : i32
    %22 = vector.broadcast %21 : i32 to vector<8x1xi32>
    %23 = arith.addi %20, %22 : vector<8x1xi32>
    %c2_i32 = arith.constant 2 : i32
    %24 = vector.broadcast %c2_i32 : i32 to vector<8x1xi32>
    %25 = arith.cmpi slt, %23, %24 : vector<8x1xi32>
    %cst_8 = arith.constant 0.000000e+00 : f32
    %26 = vector.shape_cast %25 : vector<8x1xi1> to vector<8x1xi1>
    %27 = vector.broadcast %26 : vector<8x1xi1> to vector<8x4xi1>
    %28 = vector.broadcast %cst_8 : f32 to vector<8x4xf32>
    %29 = arith.select %27, %19, %28 : vector<8x4xi1>, vector<8x4xf32>
    %c0_9 = arith.constant 0 : index
    %c0_10 = arith.constant 0 : index
    %30 = vector.load %arg4[%c0_9, %c0_10] : memref<8x4xf32, #tpu.memory_space<vmem>>, vector<8x4xf32>
    tpu.vector_store %arg4[%c0_9, %c0_10], %29 {strides = array<i32>} : memref<8x4xf32, #tpu.memory_space<vmem>>, vector<8x4xf32>,
    return
  }
  func.func @transform_0(%arg0: i32) -> (i32, i32) {
    %c0_i32 = arith.constant 0 : i32
    %c0_i32_0 = arith.constant 0 : i32
    return %arg0, %c0_i32 : i32, i32
  }
  func.func @transform_1(%arg0: i32) -> (i32, i32) {
    %c0_i32 = arith.constant 0 : i32
    %c0_i32_0 = arith.constant 0 : i32
    %c0_i32_1 = arith.constant 0 : i32
    return %c0_i32, %c0_i32_0 : i32, i32
  }
  func.func @transform_2(%arg0: i32) -> (i32, i32) {
    %c0_i32 = arith.constant 0 : i32
    %c0_i32_0 = arith.constant 0 : i32
    %c0_i32_1 = arith.constant 0 : i32
    return %c0_i32, %c0_i32_0 : i32, i32
  }
  func.func @transform_3(%arg0: i32) -> (i32, i32) {
    %c0_i32 = arith.constant 0 : i32
    %c0_i32_0 = arith.constant 0 : i32
    return %arg0, %c0_i32 : i32, i32
  }
}

</mosaic_0001>

<llo_original>
// kernel: tpu_custom_call.1
$region0: #{tpu_custom_call.1}
  #allocation0 [shape = 'u32[]', space=smem, size = 0x4, offset = 0x4, fixed_abs, tag = 'smem constant byte address 0x4 - core index']
  #allocation1 [shape = 'u32[144,128]{1,0:T(1,128)}', space=vmem, size = 0x12000, scoped, tag = 'internal scratch']
  #allocation2 [shape = 'f32[1,1]{1,0:T(1,128)S(6)}', space=smem, size = 0x200, scoped, tag = 'scoped memory for tpu_custom_call.1']
  %s0 = inlined_call_operand.vmem [shape: f32[2,128], index: 0, kind: input, shape index: {}]
  %s1 = inlined_call_operand.vmem [shape: f32[1,128], index: 1, kind: input, shape index: {}]
  %s2 = inlined_call_operand.<no memory space> [shape: f32[1,1], index: 2, kind: input, shape index: {}]
  %s3 = inlined_call_operand.hbm [shape: f32[2,4], index: 3, kind: output, shape index: {}]
  %s4 = sld [smem:[#allocation0]]
  $region22: #{tpu_custom_call.1} parent=0
    _
  %s6 = ssub.s32 1, %s4
  %s7 = scalar_select 0, %s6, %s4
  %8 = sst [smem:[#allocation2]] %s2
  $region1: #{tpu_custom_call.1} parent=0
    #allocation3 [shape = 'u8[4096]{0}', space=vmem, size = 0x1000, scoped, tag = 'output window, operand 0, single buffered']
    #allocation4 [shape = 's32[1]{0}', space=sflag, size = 0x4, scoped, tag = 'scoped memory for tpu_custom_call.1']
    %9 = vsyncpa [#allocation4], 0
    // Predicated region
    $region2: #{tpu_custom_call.1} parent=1 // pred_check
      _
    $region3: #{tpu_custom_call.1} parent=1 // pred_check_branch
      %11 = sbr.rel (0) target = $region5
    $region4: #{tpu_custom_call.1} parent=1 // pred_region
      _
    $region5: #{tpu_custom_call.1} parent=1 // pred_fallthru
      _
    // Predicated region
    $region6: #{tpu_custom_call.1} parent=1 // pred_check
      _
    $region7: #{tpu_custom_call.1} parent=1 // pred_check_branch
      %13 = sbr.rel (0) target = $region9
    $region8: #{tpu_custom_call.1} parent=1 // pred_region
      _
    $region9: #{tpu_custom_call.1} parent=1 // pred_fallthru
      _
    // Predicated region
    $region10: #{tpu_custom_call.1} parent=1 // pred_check
      _
    $region11: #{tpu_custom_call.1} parent=1 // pred_check_branch
      %15 = sbr.rel (0) target = $region13
    $region12: #{tpu_custom_call.1} parent=1 // pred_region
      _
    $region13: #{tpu_custom_call.1} parent=1 // pred_fallthru
      _
    %v16 = vld [vmem:[%s0] sm:$0xff]
    %v17 = vld [vmem:[%s1] sm:$0x1]
    %v19 = vlaneseq
    %v20 = vshrl.u32 %v19, 7
    %v21 = vsub.s32 0, %v20
    %v22 = vrot.slane %v17, %v21
    %v24 = vmul.f32 %v16, %v22
    %vm25 = vcmask 261120
    %v26 = vsel %vm25, %v24, 0.0
    %27 = vadd.xlane.f32.xlu0 %v26
    %v28 = vpop.xlane.xlu0 %27
    %30 = vrot.lane.b32.xlu0 %v24, 96
    %v31 = vpop.permute.xlu0 %30
    %v33 = vsel %vm25, %v31, 0.0
    %34 = vadd.xlane.f32.xlu0 %v33
    %v35 = vpop.xlane.xlu0 %34
    %36 = vrot.lane.b32.xlu0 %v24, 64
    %v37 = vpop.permute.xlu0 %36
    %v39 = vsel %vm25, %v37, 0.0
    %40 = vadd.xlane.f32.xlu0 %v39
    %v41 = vpop.xlane.xlu0 %40
    %42 = vrot.lane.b32.xlu0 %v24, 32
    %v43 = vpop.permute.xlu0 %42
    %v45 = vsel %vm25, %v43, 0.0
    %46 = vadd.xlane.f32.xlu0 %v45
    %v47 = vpop.xlane.xlu0 %46
    %vm48 = vcmask 7168
    %v49 = vsel %vm48, %v28, %v35
    %vm50 = vcmask 15360
    %v51 = vsel %vm50, %v49, %v41
    %vm52 = vcmask 23552
    %v53 = vsel %vm52, %v51, %v47
    %s54 = sld [smem:[#allocation2]]
    %v55 = vstv %s54
    %v56 = vadd.f32 %v53, %v55
    %v57 = vlaneseq
    %v58 = vshrl.u32 %v57, 7
    %s59 = smul.u32 0, 8
    %v60 = vstv %s59
    %v61 = vadd.s32 %v58, %v60
    %vm62 = vcmp.lt.s32.totalorder %v61, 2
    %v63 = vsel %vm62, 1, 0
    %vm64 = vcmp.eq.s32.totalorder %v63, 1
    %v65 = vsel %vm64, %v56, 0.0
    %vm66 = vcmask 31744
    %67 = vst.msk [vmem:[#allocation3] sm:$0xff] %vm66, %v65
    // Predicated region
    $region14: #{tpu_custom_call.1} parent=1 // pred_check
      _
    $region15: #{tpu_custom_call.1} parent=1 // pred_check_branch
      %69 = sbr.rel (0) target = $region17
    $region16: #{tpu_custom_call.1} parent=1 // pred_region
      %s71 = ssub.s32 128, 32
      %72 = vsyncadd [#allocation4], %s71
      %s73 = sshll.u32 [#allocation3], 4
      %s74 = int_to_ptr.vmem [resolvable:$true] %s73
      %79 = dma.vmem_to_hbm [thread:$0]  %s74, 32, %s3, [#allocation4], 32, 32, 2
    $region17: #{tpu_custom_call.1} parent=1 // pred_fallthru
      _
    // Predicated region
    $region18: #{tpu_custom_call.1} parent=1 // pred_check
      _
    $region19: #{tpu_custom_call.1} parent=1 // pred_check_branch
      %81 = sbr.rel (0) target = $region21
    $region20: #{tpu_custom_call.1} parent=1 // pred_region
      %82 = dma.done [#allocation4], 128
    $region21: #{tpu_custom_call.1} parent=1 // pred_fallthru
      _
    %83 = vsyncpa [#allocation4], 1

</llo_original>
